<compile_context>
chip_gen: v7x
topology: tpu7x:2x2x1
jax: 0.10.0
libtpu: 0.0.40
codegen_flags: <defaults>
</compile_context>

<pallas_src>
import functools

import jax
import jax.numpy as jnp
from jax.experimental import pallas as pl
from jax.experimental.pallas import tpu as pltpu

_LANES = 128      # lane (fast) axis width of a vreg
_SUBLANES = 8     # f32 sublane count of a vreg
_MAX_BLOCK_ROWS = 512   # 512 x 128 x 4 B = 256 KiB per output block


def _temp_transform_kernel(x_ref, out_ref):
    # x_ref:  scalar-prefetch SMEM ref, shape (1,), int32 — leading-zero count.
    # out_ref: VMEM (block_rows, 128) float32 output tile.
    x = x_ref[0]
    tile = pl.program_id(0)
    block_rows = out_ref.shape[0]
    row = jax.lax.broadcasted_iota(jnp.int32, out_ref.shape, 0)
    col = jax.lax.broadcasted_iota(jnp.int32, out_ref.shape, 1)
    # Global (flattened) element index of each lane in this tile.
    gidx = (tile * block_rows + row) * _LANES + col
    # a[i] = 0 for i < x, 1 otherwise  <=>  (i >= x) as float.
    out_ref[...] = (gidx >= x).astype(jnp.float32)


def _temp_transform_jax(x, vrange: int) -> jax.Array:
    # Pure-JAX path for tiny outputs: launch overhead of a standalone
    # pallas_call dwarfs the single store; let XLA fuse this into the consumer.
    x = jnp.asarray(x, dtype=jnp.int32)
    return (jnp.arange(vrange, dtype=jnp.int32) >= x).astype(jnp.float32)


@functools.partial(jax.jit, static_argnums=(1, 2))
def _temp_transform_pallas(x, vrange: int, block_rows: int) -> jax.Array:
    rows = pl.cdiv(vrange, _LANES)
    rows = pl.cdiv(rows, _SUBLANES) * _SUBLANES           # sublane-dense
    num_tiles = pl.cdiv(rows, block_rows)
    rows = num_tiles * block_rows                          # pad to whole tiles

    x_smem = jnp.asarray(x, dtype=jnp.int32).reshape((1,))

    out2d = pl.pallas_call(
        _temp_transform_kernel,
        out_shape=jax.ShapeDtypeStruct((rows, _LANES), jnp.float32),
        grid_spec=pltpu.PrefetchScalarGridSpec(
            num_scalar_prefetch=1,
            grid=(num_tiles,),
            in_specs=[],
            out_specs=pl.BlockSpec((block_rows, _LANES),
                                   lambda i, x_sref: (i, 0)),
        ),
        compiler_params=pltpu.CompilerParams(
            dimension_semantics=("parallel",),
        ),
    )(x_smem)

    # Drop the padding and restore the logical 1-D shape.
    return out2d.reshape(-1)[:vrange]


def temp_transform(x, vrange: int, *, force_pallas: bool = False) -> jax.Array:
    """Pallas equivalent of TempTransform(vrange).forward(x).

    Args:
      x: scalar int — number of leading entries set to 0.
      vrange: static output length.
      force_pallas: run the Pallas kernel even for tiny vrange.
    Returns:
      float32 vector of shape (vrange,): zeros for indices < x, ones elsewhere.
    """
    if vrange < 1024 and not force_pallas:
        return _temp_transform_jax(x, vrange)

    rows = pl.cdiv(pl.cdiv(vrange, _LANES), _SUBLANES) * _SUBLANES
    block_rows = min(_MAX_BLOCK_ROWS, rows)
    if rows >= 2 * _SUBLANES and block_rows == rows:
        # Prefer >=2 grid steps so writeback overlaps and v7x's 2 TCs can split.
        block_rows = max(_SUBLANES, (rows // 2) // _SUBLANES * _SUBLANES)
    return _temp_transform_pallas(x, vrange, block_rows)


if __name__ == "__main__":
    key = jax.random.PRNGKey(0)

    def _ref(x_val, vrange):
        return jnp.where(jnp.arange(vrange) < x_val, 0.0, 1.0).astype(jnp.float32)

    # 1) Pallas path: vrange large enough for sublane-dense tiling + 2-tile grid.
    vrange_big = 4096
    x_big = jax.random.randint(key, (), minval=1, maxval=vrange_big,
                               dtype=jnp.int32)
    out_big = jax.block_until_ready(temp_transform(x_big, vrange_big))
    assert out_big.shape == (vrange_big,) and out_big.dtype == jnp.float32
    assert bool(jnp.all(out_big == _ref(x_big, vrange_big)))

    # 2) Pallas path forced for a small, non-tile-aligned vrange (padding path).
    vrange_small = 128
    x_small = jax.random.randint(jax.random.fold_in(key, 1), (),
                                 minval=1, maxval=16, dtype=jnp.int32)
    out_small = jax.block_until_ready(
        temp_transform(x_small, vrange_small, force_pallas=True))
    assert out_small.shape == (vrange_small,)
    assert bool(jnp.all(out_small == _ref(x_small, vrange_small)))

    # 3) Default tiny-output path (pure-JAX fallback, fuses into consumers).
    out_tiny = jax.block_until_ready(temp_transform(x_small, vrange_small))
    assert bool(jnp.all(out_tiny == _ref(x_small, vrange_small)))

    print("KERNEL_OK")
</pallas_src>

<mosaic_0001>
module attributes {stable_mosaic.version = 11 : i64} {
  func.func @_temp_transform_kernel(%arg0: i32, %arg1: memref<1xi32, #tpu.memory_space<smem>>, %arg2: memref<16x128xf32, #tpu.memory_space<vmem>>) attributes {dimension_semantics = [#tpu.dimension_semantics<parallel>], iteration_bounds = array<i64: 2>, scalar_prefetch = 1 : i64, scratch_operands = 0 : i64, tpu.core_type = #tpu.core_type<tc>, window_params = [{transform_indices = @transform_0, window_bounds = array<i64: 16, 128>}]} {
    %c0 = arith.constant 0 : index
    %0 = memref.load %arg1[%c0] : memref<1xi32, #tpu.memory_space<smem>>
    %1 = tpu.iota {dimensions = array<i32: 0>} : vector<16x128xi32>
    %2 = tpu.iota {dimensions = array<i32: 1>} : vector<16x128xi32>
    %c16_i32 = arith.constant 16 : i32
    %3 = arith.muli %arg0, %c16_i32 : i32
    %4 = vector.broadcast %3 : i32 to vector<16x128xi32>
    %5 = arith.addi %4, %1 : vector<16x128xi32>
    %c128_i32 = arith.constant 128 : i32
    %6 = vector.broadcast %c128_i32 : i32 to vector<16x128xi32>
    %7 = arith.muli %5, %6 : vector<16x128xi32>
    %8 = arith.addi %7, %2 : vector<16x128xi32>
    %9 = vector.broadcast %0 : i32 to vector<16x128xi32>
    %10 = arith.cmpi sge, %8, %9 : vector<16x128xi32>
    %11 = arith.extui %10 : vector<16x128xi1> to vector<16x128xi32>
    %12 = arith.sitofp %11 : vector<16x128xi32> to vector<16x128xf32>
    %c0_0 = arith.constant 0 : index
    %c0_1 = arith.constant 0 : index
    %13 = vector.load %arg2[%c0_0, %c0_1] : memref<16x128xf32, #tpu.memory_space<vmem>>, vector<16x128xf32>
    tpu.vector_store %arg2[%c0_0, %c0_1], %12 {strides = array<i32>} : memref<16x128xf32, #tpu.memory_space<vmem>>, vector<16x128xf32>,
    return
  }
  func.func @transform_0(%arg0: i32, %arg1: memref<1xi32, #tpu.memory_space<smem>>) -> (i32, i32) {
    %c0_i32 = arith.constant 0 : i32
    %c0_i32_0 = arith.constant 0 : i32
    return %arg0, %c0_i32 : i32, i32
  }
}

</mosaic_0001>

<llo_original>
// kernel: _temp_transform_pallas.1
$region0: #{_temp_transform_pallas.1}
  #allocation0 [shape = 'u32[]', space=smem, size = 0x4, offset = 0x4, fixed_abs, tag = 'smem constant byte address 0x4 - core index']
  #allocation1 [shape = 'u32[144,128]{1,0:T(1,128)}', space=vmem, size = 0x12000, scoped, tag = 'internal scratch']
  #allocation2 [shape = 's32[1]{0}', space=sflag, size = 0x4, scoped, tag = 'scoped memory for _temp_transform_pallas.1']
  #allocation3 [shape = 's32[1]{0:T(128)S(6)}', space=smem, size = 0x200, scoped, tag = 'prefetched SMEM operand 0']
  %s0 = inlined_call_operand.<no memory space> [shape: s32[1], index: 0, kind: input, shape index: {}]
  %s1 = inlined_call_operand.hbm [shape: f32[32,128], index: 1, kind: output, shape index: {}]
  %s2 = sld [smem:[#allocation0]]
  $region25: #{_temp_transform_pallas.1} parent=0
    _
  %s4 = ssub.s32 1, %s2
  %s5 = scalar_select 0, %s4, %s2
  %6 = sst [smem:[#allocation3]] %s0
  $region1: #{_temp_transform_pallas.1} parent=0
    #allocation4 [shape = 'u8[16384]{0}', space=vmem, size = 0x4000, scoped, tag = 'output window, operand 0']
    #allocation5 [shape = 's32[2]{0}', space=sflag, size = 0x8, scoped, tag = 'scoped memory for _temp_transform_pallas.1']
    %7 = vsyncpa [#allocation5], 0
    %s8 = scalar_lea.sflag [#allocation5], 1
    %9 = vsyncpa %s8, 0
    loop: start=0, step=1, limit=3
    $region2: #{_temp_transform_pallas.1} parent=1 // loop_pre_header
      _
    $region3: #{_temp_transform_pallas.1} parent=1 // loop_header
      %s11 = sphi 0, %s15
      %p12 = scmp.ge.s32.totalorder %s11, 3
      %s20 = sphi 0, %s22
      %s23 = sphi 0, %s20
      %s33 = sphi 0, %s23
    $region4: #{_temp_transform_pallas.1} parent=1 // loop_header_branch
      %14 = sbr.rel (%p12) target = $region8
    $region5: #{_temp_transform_pallas.1} parent=1 // loop_body
      %s16 = ssub.s32 %s11, 1
      %s17 = sadd.s32 %s11, 1
      %s18 = ssub.s32 %s11, %s17
      %p19 = scmp.eq.s32.totalorder %s18, 0
      %s21 = sadd.s32 %s20, 1
      %s22 = scalar_select %p19, %s20, %s21
      %p24 = pneg %p19
      %p25 = scmp.eq.s32.totalorder %s11, 1
      %p26 = por %p24, %p25
      %p27 = scmp.ne.s32.totalorder %s20, %s23
      %p28 = scmp.eq.s32.totalorder %s11, 0
      %p29 = por %p27, %p28
      %p30 = scmp.ne.s32.totalorder %s20, %s23
      %p31 = scmp.eq.s32.totalorder %s16, 1
      %p32 = por %p30, %p31
      %p34 = scmp.ne.s32.totalorder %s23, %s33
      %p35 = scmp.eq.s32.totalorder %s16, 0
      %p36 = por %p34, %p35
      %p37 = scmp.lt.s32.totalorder %s11, 2
      // Predicated region
      $region9: #{_temp_transform_pallas.1} parent=5 // pred_check
        %p38 = pneg %p37
      $region10: #{_temp_transform_pallas.1} parent=5 // pred_check_branch
        %40 = sbr.rel (%p38) target = $region12
      $region11: #{_temp_transform_pallas.1} parent=5 // pred_region
        %p41 = pneg %p29
        %p42 = pneg %p26
        %s43 = sand.u32 %s20, 1
        %s44 = scalar_lea.sflag [#allocation5], %s43
        %s45 = sand.u32 %s20, 1
        %s46 = smul.addr %s45, 16
        %s47 = scalar_lea.vmem [#allocation4], %s46
        %s48 = smul.u32 2, %s11
        %s49 = sld [smem:[#allocation3]]
        %v50 = vlaneseq
        %v51 = vshrl.u32 %v50, 7
        %v52 = vadd.s32 %v51, 8
        %v53 = vlaneseq
        %v54 = vand.u32 %v53, 127
        %s55 = smul.u32 %s11, 16
        %v56 = vstv %s55
        %v57 = vadd.s32 %v56, %v51
        %v58 = vadd.s32 %v56, %v52
        %v59 = vmul.u32 %v57, 128
        %v60 = vmul.u32 %v58, 128
        %v61 = vadd.s32 %v59, %v54
        %v62 = vadd.s32 %v60, %v54
        %v63 = vstv %s49
        %vm64 = vcmp.ge.s32.totalorder %v61, %v63
        %vm65 = vcmp.ge.s32.totalorder %v62, %v63
        %v66 = vsel %vm64, 1, 0
        %v67 = vsel %vm65, 1, 0
        %v68 = vcvt.s32.f32 %v66
        %v69 = vcvt.s32.f32 %v67
        %70 = vst [vmem:[%s47] sm:$0xff] %v68
        %71 = vst [vmem:[%s47 + $0x8] sm:$0xff] %v69
        %s72 = sand.u32 %s20, 1
        %s73 = scalar_lea.sflag [#allocation5], %s72
        %s74 = sand.u32 %s20, 1
        %s75 = smul.addr %s74, 16
        %s76 = scalar_lea.vmem [#allocation4], %s75
        // Predicated region
        $region13: #{_temp_transform_pallas.1} parent=11 // pred_check
          %p77 = pneg %p26
        $region14: #{_temp_transform_pallas.1} parent=11 // pred_check_branch
          %79 = sbr.rel (%p77) target = $region16
        $region15: #{_temp_transform_pallas.1} parent=11 // pred_region
          %s80 = smul.u32 2, %s11
          %s82 = ssub.s32 256, 256
          %83 = vsyncadd %s73, %s82
          %s84 = smul.addr %s80, 128
          %s85 = scalar_lea.hbm %s1, %s84
          %s86 = sshll.u32 %s76, 4
          %s87 = int_to_ptr.vmem [resolvable:$true] %s86
          %92 = dma.vmem_to_hbm [thread:$0]  %s87, 256, %s85, %s73, 128, 128, 8
        $region16: #{_temp_transform_pallas.1} parent=11 // pred_fallthru
          _
      $region12: #{_temp_transform_pallas.1} parent=5 // pred_fallthru
        _
      %p93 = scmp.le.s32.totalorder 1, %s11
      // Predicated region
      $region17: #{_temp_transform_pallas.1} parent=5 // pred_check
        %p94 = pneg %p93
      $region18: #{_temp_transform_pallas.1} parent=5 // pred_check_branch
        %96 = sbr.rel (%p94) target = $region20
      $region19: #{_temp_transform_pallas.1} parent=5 // pred_region
        %s97 = ssub.s32 %s11, 1
        // Predicated region
        $region21: #{_temp_transform_pallas.1} parent=19 // pred_check
          %p98 = pneg %p32
        $region22: #{_temp_transform_pallas.1} parent=19 // pred_check_branch
          %100 = sbr.rel (%p98) target = $region24
        $region23: #{_temp_transform_pallas.1} parent=19 // pred_region
          %s101 = sand.u32 %s23, 1
          %s102 = scalar_lea.sflag [#allocation5], %s101
          %s103 = sand.u32 %s23, 1
          %s104 = smul.addr %s103, 16
          %s105 = scalar_lea.vmem [#allocation4], %s104
          %106 = dma.done %s102, 256
        $region24: #{_temp_transform_pallas.1} parent=19 // pred_fallthru
          _
      $region20: #{_temp_transform_pallas.1} parent=5 // pred_fallthru
        _
    $region6: #{_temp_transform_pallas.1} parent=1 // loop_footer
      %s15 = sadd.s32 1, %s11
    $region7: #{_temp_transform_pallas.1} parent=1 // loop_footer_branch
      %10 = sbr.rel target = $region3
    $region8: #{_temp_transform_pallas.1} parent=1 // loop_exit
      _
    %107 = vsyncpa [#allocation5], 1
    %s108 = scalar_lea.sflag [#allocation5], 1
    %109 = vsyncpa %s108, 1

</llo_original>
